<compile_context>
chip_gen: v7x
topology: tpu7x:2x2x1
jax: 0.10.0
libtpu: 0.0.40
codegen_flags: <defaults>
</compile_context>

<pallas_src>
import functools

import jax
import jax.numpy as jnp
from jax.experimental import pallas as pl
from jax.experimental.pallas import tpu as pltpu

EPS = 1e-5
N_IN, N_HID, N_OUT = 3, 4, 5
PARAM_SLAB_LEN = 64  # 12 (w1) + 20 (w2') + 5 (b2') = 37, padded to 64 for tidy SMEM sizing


# --- static index helpers into the packed parameter slab ---------------------------------
def W1(k, j):  # w1[k, j], k in [0,3), j in [0,4)
    return k * N_HID + j


def W2(k, j):  # w2'[k, j], k in [0,4), j in [0,5)
    return N_IN * N_HID + k * N_OUT + j


def B2(j):  # b2'[j], j in [0,5)
    return N_IN * N_HID + N_HID * N_OUT + j


# --- kernel -------------------------------------------------------------------------------
def model_kernel(params_ref, x_ref, o_ref, *, batch):
    """params_ref: (64,) f32 in SMEM.  x_ref: (8, B_pad) f32, rows 0..2 = features of x^T,
    batch on lanes (zero-padded).  o_ref: (8, B_pad) f32, rows 0..4 = outputs^T."""
    b_pad = x_ref.shape[1]
    inv_b = 1.0 / float(batch)

    # lane mask selecting real batch elements (needed for the variance; the mean needs no
    # mask because padded lanes of x are exactly zero and b1 has been dropped).
    lane = jax.lax.broadcasted_iota(jnp.int32, (1, b_pad), 1)
    mask = (lane < batch).astype(jnp.float32)

    # feature rows of x^T, each (1, B_pad)
    xr = [x_ref[k:k + 1, :] for k in range(N_IN)]

    # linear1 (bias omitted: it cancels under batch-norm centering) + batchnorm,
    # unrolled as scalar*vector FMAs on the VPU.
    h = []
    for j in range(N_HID):
        acc = params_ref[W1(0, j)] * xr[0]
        for k in range(1, N_IN):
            acc = acc + params_ref[W1(k, j)] * xr[k]
        mu = jnp.sum(acc, axis=1, keepdims=True) * inv_b                   # (1, 1)
        c = acc - mu
        var = jnp.sum(c * c * mask, axis=1, keepdims=True) * inv_b         # (1, 1) biased
        h.append(c * jax.lax.rsqrt(var + EPS))                             # (1, B_pad)

    # linear2 with gamma folded into the weights and beta folded into the bias.
    for j in range(N_OUT):
        acc = params_ref[W2(0, j)] * h[0]
        for k in range(1, N_HID):
            acc = acc + params_ref[W2(k, j)] * h[k]
        o_ref[j:j + 1, :] = acc + params_ref[B2(j)]

    # keep the padding rows of the output slab defined
    o_ref[N_OUT:, :] = jnp.zeros((o_ref.shape[0] - N_OUT, b_pad), jnp.float32)


# --- wrapper ------------------------------------------------------------------------------
def _pack_params(p):
    """Fold BN affine / drop b1 and pack everything into one small f32 slab."""
    w1 = p["w1"]                                        # (3, 4)
    w2f = p["gamma"].reshape(N_HID, 1) * p["w2"]        # (4, 5)  gamma folded into w2
    b2f = p["beta"] @ p["w2"] + p["b2"]                 # (1, 5)  beta folded into bias
    flat = jnp.concatenate(
        [w1.reshape(-1), w2f.reshape(-1), b2f.reshape(-1)]).astype(jnp.float32)
    return jnp.pad(flat, (0, PARAM_SLAB_LEN - flat.shape[0]))   # (64,)


def model_forward(x, params):
    """x: (B, 3) float32 -> (B, 5) float32."""
    B = x.shape[0]
    B_pad = ((B + 127) // 128) * 128                    # lane-dense width (>= 128)

    flat = _pack_params(params)                         # single SMEM slab
    # batch-on-lanes layout: x^T zero-padded into a lane-dense (8, B_pad) slab
    xt = jnp.zeros((8, B_pad), jnp.float32).at[:N_IN, :B].set(x.T)

    kernel = functools.partial(model_kernel, batch=B)
    out_pad = pl.pallas_call(
        kernel,
        out_shape=jax.ShapeDtypeStruct((8, B_pad), jnp.float32),
        in_specs=[
            pl.BlockSpec(memory_space=pltpu.MemorySpace.SMEM),    # packed params
            pl.BlockSpec((8, B_pad), lambda: (0, 0)),             # x^T slab (VMEM)
        ],
        out_specs=pl.BlockSpec((8, B_pad), lambda: (0, 0)),
        cost_estimate=pl.CostEstimate(
            flops=2 * B * (N_IN * N_HID + N_HID * N_OUT) + 10 * B * N_HID,
            transcendentals=N_HID,
            bytes_accessed=2 * 8 * B_pad * 4 + PARAM_SLAB_LEN * 4,
        ),
    )(flat, xt)

    return out_pad[:N_OUT, :B].T                        # (B, 5)


# --- params / reference -------------------------------------------------------------------
def init_params():
    """Deterministic parameter init matching the PyTorch module's shapes."""
    k = jax.random.PRNGKey(42)
    k1, k2, k3, k4 = jax.random.split(k, 4)
    # stored as (in_features, out_features) == W_pytorch.T
    w1 = jax.random.normal(k1, (3, 4), jnp.float32) * 0.5
    b1 = jax.random.normal(k2, (1, 4), jnp.float32) * 0.1   # NOTE: cancels under BN centering
    w2 = jax.random.normal(k3, (4, 5), jnp.float32) * 0.5
    b2 = jax.random.normal(k4, (1, 5), jnp.float32) * 0.1
    gamma = jnp.ones((1, 4), jnp.float32)    # BatchNorm1d weight
    beta = jnp.zeros((1, 4), jnp.float32)    # BatchNorm1d bias
    return {"w1": w1, "b1": b1, "gamma": gamma, "beta": beta, "w2": w2, "b2": b2}


def reference_forward(x, p):
    """Unfused reference: exact PyTorch ModelForTest forward (train-mode BN, biased var)."""
    h = x @ p["w1"] + p["b1"]
    mean = jnp.mean(h, axis=0, keepdims=True)
    var = jnp.mean((h - mean) ** 2, axis=0, keepdims=True)
    h = (h - mean) * jax.lax.rsqrt(var + EPS) * p["gamma"] + p["beta"]
    return h @ p["w2"] + p["b2"]


if __name__ == "__main__":
    params = init_params()
    x = jax.random.normal(jax.random.PRNGKey(0), (8, 3), jnp.float32)

    out = jax.block_until_ready(model_forward(x, params))
    ref = reference_forward(x, params)

    assert out.shape == (8, 5)
    assert jnp.allclose(out, ref, atol=1e-4, rtol=1e-4)

    print("KERNEL_OK")
</pallas_src>

<mosaic_0001>
module attributes {stable_mosaic.version = 11 : i64} {
  func.func @model_kernel(%arg0: memref<64xf32, #tpu.memory_space<smem>>, %arg1: memref<8x128xf32, #tpu.memory_space<vmem>>, %arg2: memref<8x128xf32, #tpu.memory_space<vmem>>) attributes {dimension_semantics = [], scalar_prefetch = 0 : i64, scratch_operands = 0 : i64, tpu.core_type = #tpu.core_type<tc>} {
    %0 = tpu.iota {dimensions = array<i32: 1>} : vector<1x128xi32>
    %c8_i32 = arith.constant 8 : i32
    %1 = vector.broadcast %c8_i32 : i32 to vector<1x128xi32>
    %2 = arith.cmpi slt, %0, %1 : vector<1x128xi32>
    %3 = arith.extui %2 : vector<1x128xi1> to vector<1x128xi32>
    %4 = arith.sitofp %3 : vector<1x128xi32> to vector<1x128xf32>
    %c0 = arith.constant 0 : index
    %c0_0 = arith.constant 0 : index
    %5 = vector.load %arg1[%c0, %c0_0] : memref<8x128xf32, #tpu.memory_space<vmem>>, vector<1x128xf32>
    %c1 = arith.constant 1 : index
    %c0_1 = arith.constant 0 : index
    %6 = vector.load %arg1[%c1, %c0_1] : memref<8x128xf32, #tpu.memory_space<vmem>>, vector<1x128xf32>
    %c2 = arith.constant 2 : index
    %c0_2 = arith.constant 0 : index
    %7 = vector.load %arg1[%c2, %c0_2] : memref<8x128xf32, #tpu.memory_space<vmem>>, vector<1x128xf32>
    %c0_3 = arith.constant 0 : index
    %8 = memref.load %arg0[%c0_3] : memref<64xf32, #tpu.memory_space<smem>>
    %9 = vector.broadcast %8 : f32 to vector<1x128xf32>
    %10 = arith.mulf %9, %5 : vector<1x128xf32>
    %c4 = arith.constant 4 : index
    %11 = memref.load %arg0[%c4] : memref<64xf32, #tpu.memory_space<smem>>
    %12 = vector.broadcast %11 : f32 to vector<1x128xf32>
    %13 = arith.mulf %12, %6 : vector<1x128xf32>
    %14 = arith.addf %10, %13 : vector<1x128xf32>
    %c8 = arith.constant 8 : index
    %15 = memref.load %arg0[%c8] : memref<64xf32, #tpu.memory_space<smem>>
    %16 = vector.broadcast %15 : f32 to vector<1x128xf32>
    %17 = arith.mulf %16, %7 : vector<1x128xf32>
    %18 = arith.addf %14, %17 : vector<1x128xf32>
    %cst = arith.constant dense<0.000000e+00> : vector<1xf32>
    %19 = vector.multi_reduction <add>, %18, %cst [1] : vector<1x128xf32> to vector<1xf32>
    %20 = vector.shape_cast %19 : vector<1xf32> to vector<1x1xf32>
    %cst_4 = arith.constant 1.250000e-01 : f32
    %21 = vector.broadcast %cst_4 : f32 to vector<1x1xf32>
    %22 = arith.mulf %20, %21 : vector<1x1xf32>
    %23 = vector.broadcast %22 : vector<1x1xf32> to vector<1x128xf32>
    %24 = arith.subf %18, %23 : vector<1x128xf32>
    %25 = arith.mulf %24, %24 : vector<1x128xf32>
    %26 = arith.mulf %25, %4 : vector<1x128xf32>
    %cst_5 = arith.constant dense<0.000000e+00> : vector<1xf32>
    %27 = vector.multi_reduction <add>, %26, %cst_5 [1] : vector<1x128xf32> to vector<1xf32>
    %28 = vector.shape_cast %27 : vector<1xf32> to vector<1x1xf32>
    %cst_6 = arith.constant 1.250000e-01 : f32
    %29 = vector.broadcast %cst_6 : f32 to vector<1x1xf32>
    %30 = arith.mulf %28, %29 : vector<1x1xf32>
    %cst_7 = arith.constant 9.99999974E-6 : f32
    %31 = vector.broadcast %cst_7 : f32 to vector<1x1xf32>
    %32 = arith.addf %30, %31 : vector<1x1xf32>
    %33 = math.rsqrt %32 : vector<1x1xf32>
    %34 = vector.broadcast %33 : vector<1x1xf32> to vector<1x128xf32>
    %35 = arith.mulf %24, %34 : vector<1x128xf32>
    %c1_8 = arith.constant 1 : index
    %36 = memref.load %arg0[%c1_8] : memref<64xf32, #tpu.memory_space<smem>>
    %37 = vector.broadcast %36 : f32 to vector<1x128xf32>
    %38 = arith.mulf %37, %5 : vector<1x128xf32>
    %c5 = arith.constant 5 : index
    %39 = memref.load %arg0[%c5] : memref<64xf32, #tpu.memory_space<smem>>
    %40 = vector.broadcast %39 : f32 to vector<1x128xf32>
    %41 = arith.mulf %40, %6 : vector<1x128xf32>
    %42 = arith.addf %38, %41 : vector<1x128xf32>
    %c9 = arith.constant 9 : index
    %43 = memref.load %arg0[%c9] : memref<64xf32, #tpu.memory_space<smem>>
    %44 = vector.broadcast %43 : f32 to vector<1x128xf32>
    %45 = arith.mulf %44, %7 : vector<1x128xf32>
    %46 = arith.addf %42, %45 : vector<1x128xf32>
    %cst_9 = arith.constant dense<0.000000e+00> : vector<1xf32>
    %47 = vector.multi_reduction <add>, %46, %cst_9 [1] : vector<1x128xf32> to vector<1xf32>
    %48 = vector.shape_cast %47 : vector<1xf32> to vector<1x1xf32>
    %cst_10 = arith.constant 1.250000e-01 : f32
    %49 = vector.broadcast %cst_10 : f32 to vector<1x1xf32>
    %50 = arith.mulf %48, %49 : vector<1x1xf32>
    %51 = vector.broadcast %50 : vector<1x1xf32> to vector<1x128xf32>
    %52 = arith.subf %46, %51 : vector<1x128xf32>
    %53 = arith.mulf %52, %52 : vector<1x128xf32>
    %54 = arith.mulf %53, %4 : vector<1x128xf32>
    %cst_11 = arith.constant dense<0.000000e+00> : vector<1xf32>
    %55 = vector.multi_reduction <add>, %54, %cst_11 [1] : vector<1x128xf32> to vector<1xf32>
    %56 = vector.shape_cast %55 : vector<1xf32> to vector<1x1xf32>
    %cst_12 = arith.constant 1.250000e-01 : f32
    %57 = vector.broadcast %cst_12 : f32 to vector<1x1xf32>
    %58 = arith.mulf %56, %57 : vector<1x1xf32>
    %cst_13 = arith.constant 9.99999974E-6 : f32
    %59 = vector.broadcast %cst_13 : f32 to vector<1x1xf32>
    %60 = arith.addf %58, %59 : vector<1x1xf32>
    %61 = math.rsqrt %60 : vector<1x1xf32>
    %62 = vector.broadcast %61 : vector<1x1xf32> to vector<1x128xf32>
    %63 = arith.mulf %52, %62 : vector<1x128xf32>
    %c2_14 = arith.constant 2 : index
    %64 = memref.load %arg0[%c2_14] : memref<64xf32, #tpu.memory_space<smem>>
    %65 = vector.broadcast %64 : f32 to vector<1x128xf32>
    %66 = arith.mulf %65, %5 : vector<1x128xf32>
    %c6 = arith.constant 6 : index
    %67 = memref.load %arg0[%c6] : memref<64xf32, #tpu.memory_space<smem>>
    %68 = vector.broadcast %67 : f32 to vector<1x128xf32>
    %69 = arith.mulf %68, %6 : vector<1x128xf32>
    %70 = arith.addf %66, %69 : vector<1x128xf32>
    %c10 = arith.constant 10 : index
    %71 = memref.load %arg0[%c10] : memref<64xf32, #tpu.memory_space<smem>>
    %72 = vector.broadcast %71 : f32 to vector<1x128xf32>
    %73 = arith.mulf %72, %7 : vector<1x128xf32>
    %74 = arith.addf %70, %73 : vector<1x128xf32>
    %cst_15 = arith.constant dense<0.000000e+00> : vector<1xf32>
    %75 = vector.multi_reduction <add>, %74, %cst_15 [1] : vector<1x128xf32> to vector<1xf32>
    %76 = vector.shape_cast %75 : vector<1xf32> to vector<1x1xf32>
    %cst_16 = arith.constant 1.250000e-01 : f32
    %77 = vector.broadcast %cst_16 : f32 to vector<1x1xf32>
    %78 = arith.mulf %76, %77 : vector<1x1xf32>
    %79 = vector.broadcast %78 : vector<1x1xf32> to vector<1x128xf32>
    %80 = arith.subf %74, %79 : vector<1x128xf32>
    %81 = arith.mulf %80, %80 : vector<1x128xf32>
    %82 = arith.mulf %81, %4 : vector<1x128xf32>
    %cst_17 = arith.constant dense<0.000000e+00> : vector<1xf32>
    %83 = vector.multi_reduction <add>, %82, %cst_17 [1] : vector<1x128xf32> to vector<1xf32>
    %84 = vector.shape_cast %83 : vector<1xf32> to vector<1x1xf32>
    %cst_18 = arith.constant 1.250000e-01 : f32
    %85 = vector.broadcast %cst_18 : f32 to vector<1x1xf32>
    %86 = arith.mulf %84, %85 : vector<1x1xf32>
    %cst_19 = arith.constant 9.99999974E-6 : f32
    %87 = vector.broadcast %cst_19 : f32 to vector<1x1xf32>
    %88 = arith.addf %86, %87 : vector<1x1xf32>
    %89 = math.rsqrt %88 : vector<1x1xf32>
    %90 = vector.broadcast %89 : vector<1x1xf32> to vector<1x128xf32>
    %91 = arith.mulf %80, %90 : vector<1x128xf32>
    %c3 = arith.constant 3 : index
    %92 = memref.load %arg0[%c3] : memref<64xf32, #tpu.memory_space<smem>>
    %93 = vector.broadcast %92 : f32 to vector<1x128xf32>
    %94 = arith.mulf %93, %5 : vector<1x128xf32>
    %c7 = arith.constant 7 : index
    %95 = memref.load %arg0[%c7] : memref<64xf32, #tpu.memory_space<smem>>
    %96 = vector.broadcast %95 : f32 to vector<1x128xf32>
    %97 = arith.mulf %96, %6 : vector<1x128xf32>
    %98 = arith.addf %94, %97 : vector<1x128xf32>
    %c11 = arith.constant 11 : index
    %99 = memref.load %arg0[%c11] : memref<64xf32, #tpu.memory_space<smem>>
    %100 = vector.broadcast %99 : f32 to vector<1x128xf32>
    %101 = arith.mulf %100, %7 : vector<1x128xf32>
    %102 = arith.addf %98, %101 : vector<1x128xf32>
    %cst_20 = arith.constant dense<0.000000e+00> : vector<1xf32>
    %103 = vector.multi_reduction <add>, %102, %cst_20 [1] : vector<1x128xf32> to vector<1xf32>
    %104 = vector.shape_cast %103 : vector<1xf32> to vector<1x1xf32>
    %cst_21 = arith.constant 1.250000e-01 : f32
    %105 = vector.broadcast %cst_21 : f32 to vector<1x1xf32>
    %106 = arith.mulf %104, %105 : vector<1x1xf32>
    %107 = vector.broadcast %106 : vector<1x1xf32> to vector<1x128xf32>
    %108 = arith.subf %102, %107 : vector<1x128xf32>
    %109 = arith.mulf %108, %108 : vector<1x128xf32>
    %110 = arith.mulf %109, %4 : vector<1x128xf32>
    %cst_22 = arith.constant dense<0.000000e+00> : vector<1xf32>
    %111 = vector.multi_reduction <add>, %110, %cst_22 [1] : vector<1x128xf32> to vector<1xf32>
    %112 = vector.shape_cast %111 : vector<1xf32> to vector<1x1xf32>
    %cst_23 = arith.constant 1.250000e-01 : f32
    %113 = vector.broadcast %cst_23 : f32 to vector<1x1xf32>
    %114 = arith.mulf %112, %113 : vector<1x1xf32>
    %cst_24 = arith.constant 9.99999974E-6 : f32
    %115 = vector.broadcast %cst_24 : f32 to vector<1x1xf32>
    %116 = arith.addf %114, %115 : vector<1x1xf32>
    %117 = math.rsqrt %116 : vector<1x1xf32>
    %118 = vector.broadcast %117 : vector<1x1xf32> to vector<1x128xf32>
    %119 = arith.mulf %108, %118 : vector<1x128xf32>
    %c12 = arith.constant 12 : index
    %120 = memref.load %arg0[%c12] : memref<64xf32, #tpu.memory_space<smem>>
    %121 = vector.broadcast %120 : f32 to vector<1x128xf32>
    %122 = arith.mulf %121, %35 : vector<1x128xf32>
    %c17 = arith.constant 17 : index
    %123 = memref.load %arg0[%c17] : memref<64xf32, #tpu.memory_space<smem>>
    %124 = vector.broadcast %123 : f32 to vector<1x128xf32>
    %125 = arith.mulf %124, %63 : vector<1x128xf32>
    %126 = arith.addf %122, %125 : vector<1x128xf32>
    %c22 = arith.constant 22 : index
    %127 = memref.load %arg0[%c22] : memref<64xf32, #tpu.memory_space<smem>>
    %128 = vector.broadcast %127 : f32 to vector<1x128xf32>
    %129 = arith.mulf %128, %91 : vector<1x128xf32>
    %130 = arith.addf %126, %129 : vector<1x128xf32>
    %c27 = arith.constant 27 : index
    %131 = memref.load %arg0[%c27] : memref<64xf32, #tpu.memory_space<smem>>
    %132 = vector.broadcast %131 : f32 to vector<1x128xf32>
    %133 = arith.mulf %132, %119 : vector<1x128xf32>
    %134 = arith.addf %130, %133 : vector<1x128xf32>
    %c32 = arith.constant 32 : index
    %135 = memref.load %arg0[%c32] : memref<64xf32, #tpu.memory_space<smem>>
    %136 = vector.broadcast %135 : f32 to vector<1x128xf32>
    %137 = arith.addf %134, %136 : vector<1x128xf32>
    %c0_25 = arith.constant 0 : index
    %c0_26 = arith.constant 0 : index
    %138 = vector.load %arg2[%c0_25, %c0_26] : memref<8x128xf32, #tpu.memory_space<vmem>>, vector<1x128xf32>
    tpu.vector_store %arg2[%c0_25, %c0_26], %137 {strides = array<i32>} : memref<8x128xf32, #tpu.memory_space<vmem>>, vector<1x128xf32>,
    %c13 = arith.constant 13 : index
    %139 = memref.load %arg0[%c13] : memref<64xf32, #tpu.memory_space<smem>>
    %140 = vector.broadcast %139 : f32 to vector<1x128xf32>
    %141 = arith.mulf %140, %35 : vector<1x128xf32>
    %c18 = arith.constant 18 : index
    %142 = memref.load %arg0[%c18] : memref<64xf32, #tpu.memory_space<smem>>
    %143 = vector.broadcast %142 : f32 to vector<1x128xf32>
    %144 = arith.mulf %143, %63 : vector<1x128xf32>
    %145 = arith.addf %141, %144 : vector<1x128xf32>
    %c23 = arith.constant 23 : index
    %146 = memref.load %arg0[%c23] : memref<64xf32, #tpu.memory_space<smem>>
    %147 = vector.broadcast %146 : f32 to vector<1x128xf32>
    %148 = arith.mulf %147, %91 : vector<1x128xf32>
    %149 = arith.addf %145, %148 : vector<1x128xf32>
    %c28 = arith.constant 28 : index
    %150 = memref.load %arg0[%c28] : memref<64xf32, #tpu.memory_space<smem>>
    %151 = vector.broadcast %150 : f32 to vector<1x128xf32>
    %152 = arith.mulf %151, %119 : vector<1x128xf32>
    %153 = arith.addf %149, %152 : vector<1x128xf32>
    %c33 = arith.constant 33 : index
    %154 = memref.load %arg0[%c33] : memref<64xf32, #tpu.memory_space<smem>>
    %155 = vector.broadcast %154 : f32 to vector<1x128xf32>
    %156 = arith.addf %153, %155 : vector<1x128xf32>
    %c1_27 = arith.constant 1 : index
    %c0_28 = arith.constant 0 : index
    %157 = vector.load %arg2[%c1_27, %c0_28] : memref<8x128xf32, #tpu.memory_space<vmem>>, vector<1x128xf32>
    tpu.vector_store %arg2[%c1_27, %c0_28], %156 {strides = array<i32>} : memref<8x128xf32, #tpu.memory_space<vmem>>, vector<1x128xf32>,
    %c14 = arith.constant 14 : index
    %158 = memref.load %arg0[%c14] : memref<64xf32, #tpu.memory_space<smem>>
    %159 = vector.broadcast %158 : f32 to vector<1x128xf32>
    %160 = arith.mulf %159, %35 : vector<1x128xf32>
    %c19 = arith.constant 19 : index
    %161 = memref.load %arg0[%c19] : memref<64xf32, #tpu.memory_space<smem>>
    %162 = vector.broadcast %161 : f32 to vector<1x128xf32>
    %163 = arith.mulf %162, %63 : vector<1x128xf32>
    %164 = arith.addf %160, %163 : vector<1x128xf32>
    %c24 = arith.constant 24 : index
    %165 = memref.load %arg0[%c24] : memref<64xf32, #tpu.memory_space<smem>>
    %166 = vector.broadcast %165 : f32 to vector<1x128xf32>
    %167 = arith.mulf %166, %91 : vector<1x128xf32>
    %168 = arith.addf %164, %167 : vector<1x128xf32>
    %c29 = arith.constant 29 : index
    %169 = memref.load %arg0[%c29] : memref<64xf32, #tpu.memory_space<smem>>
    %170 = vector.broadcast %169 : f32 to vector<1x128xf32>
    %171 = arith.mulf %170, %119 : vector<1x128xf32>
    %172 = arith.addf %168, %171 : vector<1x128xf32>
    %c34 = arith.constant 34 : index
    %173 = memref.load %arg0[%c34] : memref<64xf32, #tpu.memory_space<smem>>
    %174 = vector.broadcast %173 : f32 to vector<1x128xf32>
    %175 = arith.addf %172, %174 : vector<1x128xf32>
    %c2_29 = arith.constant 2 : index
    %c0_30 = arith.constant 0 : index
    %176 = vector.load %arg2[%c2_29, %c0_30] : memref<8x128xf32, #tpu.memory_space<vmem>>, vector<1x128xf32>
    tpu.vector_store %arg2[%c2_29, %c0_30], %175 {strides = array<i32>} : memref<8x128xf32, #tpu.memory_space<vmem>>, vector<1x128xf32>,
    %c15 = arith.constant 15 : index
    %177 = memref.load %arg0[%c15] : memref<64xf32, #tpu.memory_space<smem>>
    %178 = vector.broadcast %177 : f32 to vector<1x128xf32>
    %179 = arith.mulf %178, %35 : vector<1x128xf32>
    %c20 = arith.constant 20 : index
    %180 = memref.load %arg0[%c20] : memref<64xf32, #tpu.memory_space<smem>>
    %181 = vector.broadcast %180 : f32 to vector<1x128xf32>
    %182 = arith.mulf %181, %63 : vector<1x128xf32>
    %183 = arith.addf %179, %182 : vector<1x128xf32>
    %c25 = arith.constant 25 : index
    %184 = memref.load %arg0[%c25] : memref<64xf32, #tpu.memory_space<smem>>
    %185 = vector.broadcast %184 : f32 to vector<1x128xf32>
    %186 = arith.mulf %185, %91 : vector<1x128xf32>
    %187 = arith.addf %183, %186 : vector<1x128xf32>
    %c30 = arith.constant 30 : index
    %188 = memref.load %arg0[%c30] : memref<64xf32, #tpu.memory_space<smem>>
    %189 = vector.broadcast %188 : f32 to vector<1x128xf32>
    %190 = arith.mulf %189, %119 : vector<1x128xf32>
    %191 = arith.addf %187, %190 : vector<1x128xf32>
    %c35 = arith.constant 35 : index
    %192 = memref.load %arg0[%c35] : memref<64xf32, #tpu.memory_space<smem>>
    %193 = vector.broadcast %192 : f32 to vector<1x128xf32>
    %194 = arith.addf %191, %193 : vector<1x128xf32>
    %c3_31 = arith.constant 3 : index
    %c0_32 = arith.constant 0 : index
    %195 = vector.load %arg2[%c3_31, %c0_32] : memref<8x128xf32, #tpu.memory_space<vmem>>, vector<1x128xf32>
    tpu.vector_store %arg2[%c3_31, %c0_32], %194 {strides = array<i32>} : memref<8x128xf32, #tpu.memory_space<vmem>>, vector<1x128xf32>,
    %c16 = arith.constant 16 : index
    %196 = memref.load %arg0[%c16] : memref<64xf32, #tpu.memory_space<smem>>
    %197 = vector.broadcast %196 : f32 to vector<1x128xf32>
    %198 = arith.mulf %197, %35 : vector<1x128xf32>
    %c21 = arith.constant 21 : index
    %199 = memref.load %arg0[%c21] : memref<64xf32, #tpu.memory_space<smem>>
    %200 = vector.broadcast %199 : f32 to vector<1x128xf32>
    %201 = arith.mulf %200, %63 : vector<1x128xf32>
    %202 = arith.addf %198, %201 : vector<1x128xf32>
    %c26 = arith.constant 26 : index
    %203 = memref.load %arg0[%c26] : memref<64xf32, #tpu.memory_space<smem>>
    %204 = vector.broadcast %203 : f32 to vector<1x128xf32>
    %205 = arith.mulf %204, %91 : vector<1x128xf32>
    %206 = arith.addf %202, %205 : vector<1x128xf32>
    %c31 = arith.constant 31 : index
    %207 = memref.load %arg0[%c31] : memref<64xf32, #tpu.memory_space<smem>>
    %208 = vector.broadcast %207 : f32 to vector<1x128xf32>
    %209 = arith.mulf %208, %119 : vector<1x128xf32>
    %210 = arith.addf %206, %209 : vector<1x128xf32>
    %c36 = arith.constant 36 : index
    %211 = memref.load %arg0[%c36] : memref<64xf32, #tpu.memory_space<smem>>
    %212 = vector.broadcast %211 : f32 to vector<1x128xf32>
    %213 = arith.addf %210, %212 : vector<1x128xf32>
    %c4_33 = arith.constant 4 : index
    %c0_34 = arith.constant 0 : index
    %214 = vector.load %arg2[%c4_33, %c0_34] : memref<8x128xf32, #tpu.memory_space<vmem>>, vector<1x128xf32>
    tpu.vector_store %arg2[%c4_33, %c0_34], %213 {strides = array<i32>} : memref<8x128xf32, #tpu.memory_space<vmem>>, vector<1x128xf32>,
    %cst_35 = arith.constant 0.000000e+00 : f32
    %215 = vector.broadcast %cst_35 : f32 to vector<3x128xf32>
    %c5_36 = arith.constant 5 : index
    %c0_37 = arith.constant 0 : index
    %216 = vector.load %arg2[%c5_36, %c0_37] : memref<8x128xf32, #tpu.memory_space<vmem>>, vector<3x128xf32>
    tpu.vector_store %arg2[%c5_36, %c0_37], %215 {strides = array<i32>} : memref<8x128xf32, #tpu.memory_space<vmem>>, vector<3x128xf32>,
    return
  }
}

</mosaic_0001>

<llo_original>
// kernel: tpu_custom_call.1
$region0: #{tpu_custom_call.1}
  #allocation0 [shape = 'u32[]', space=smem, size = 0x4, offset = 0x4, fixed_abs, tag = 'smem constant byte address 0x4 - core index']
  #allocation1 [shape = 'u32[144,128]{1,0:T(1,128)}', space=vmem, size = 0x12000, scoped, tag = 'internal scratch']
  %s0 = inlined_call_operand.hbm [shape: f32[64], index: 0, kind: input, shape index: {}]
  %s1 = inlined_call_operand.hbm [shape: f32[8,128], index: 1, kind: input, shape index: {}]
  %s2 = inlined_call_operand.hbm [shape: f32[8,128], index: 2, kind: output, shape index: {}]
  %s3 = sld [smem:[#allocation0]]
  $region26: #{tpu_custom_call.1} parent=0
    _
  %s5 = ssub.s32 1, %s3
  %s6 = scalar_select 0, %s5, %s3
  $region1: #{tpu_custom_call.1} parent=0
    #allocation2 [shape = 'u8[512]{0}', space=smem, size = 0x200, scoped, tag = 'input window, operand 0, single buffered']
    #allocation3 [shape = 's32[1]{0}', space=sflag, size = 0x4, scoped, tag = 'scoped memory for tpu_custom_call.1']
    #allocation4 [shape = 's32[1]{0}', space=sflag, size = 0x4, scoped, tag = 'scoped memory for tpu_custom_call.1']
    #allocation5 [shape = 's32[1]{0}', space=sflag, size = 0x4, scoped, tag = 'scoped memory for tpu_custom_call.1']
    #allocation6 [shape = 'u8[4096]{0}', space=vmem, size = 0x1000, scoped, tag = 'input window, operand 1, single buffered']
    #allocation7 [shape = 'u8[4096]{0}', space=vmem, size = 0x1000, scoped, tag = 'output window, operand 0, single buffered']
    %7 = vsyncpa [#allocation5], 0
    %8 = vsyncpa [#allocation3], 0
    %9 = vsyncpa [#allocation4], 0
    // Predicated region
    $region2: #{tpu_custom_call.1} parent=1 // pred_check
      _
    $region3: #{tpu_custom_call.1} parent=1 // pred_check_branch
      %11 = sbr.rel (0) target = $region5
    $region4: #{tpu_custom_call.1} parent=1 // pred_region
      %s13 = ssub.s32 16, 16
      %14 = vsyncadd [#allocation5], %s13
      %17 = dma.hbm_to_smem %s0, 16, [#allocation2], [#allocation5]
    $region5: #{tpu_custom_call.1} parent=1 // pred_fallthru
      _
    // Predicated region
    $region6: #{tpu_custom_call.1} parent=1 // pred_check
      _
    $region7: #{tpu_custom_call.1} parent=1 // pred_check_branch
      %19 = sbr.rel (0) target = $region9
    $region8: #{tpu_custom_call.1} parent=1 // pred_region
      %s21 = ssub.s32 128, 128
      %22 = vsyncadd [#allocation3], %s21
      %s24 = sshll.u32 [#allocation6], 4
      %s25 = int_to_ptr.vmem [resolvable:$true] %s24
      %27 = dma.hbm_to_vmem [thread:$0]  %s1, 128, %s25, [#allocation3]
    $region9: #{tpu_custom_call.1} parent=1 // pred_fallthru
      _
    // Predicated region
    $region10: #{tpu_custom_call.1} parent=1 // pred_check
      _
    $region11: #{tpu_custom_call.1} parent=1 // pred_check_branch
      %29 = sbr.rel (0) target = $region13
    $region12: #{tpu_custom_call.1} parent=1 // pred_region
      %30 = dma.done [#allocation5], 16
    $region13: #{tpu_custom_call.1} parent=1 // pred_fallthru
      _
    // Predicated region
    $region14: #{tpu_custom_call.1} parent=1 // pred_check
      _
    $region15: #{tpu_custom_call.1} parent=1 // pred_check_branch
      %32 = sbr.rel (0) target = $region17
    $region16: #{tpu_custom_call.1} parent=1 // pred_region
      %33 = dma.done [#allocation3], 128
    $region17: #{tpu_custom_call.1} parent=1 // pred_fallthru
      _
    %34 = sfence
    %v35 = vlaneseq
    %v36 = vand.u32 %v35, 127
    %vm37 = vcmp.lt.s32.totalorder %v36, 8
    %v38 = vsel %vm37, 1, 0
    %v39 = vcvt.s32.f32 %v38
    %v40 = vld [vmem:[#allocation6] sm:$0x1]
    %v41 = vld [vmem:[#allocation6 + $0x1] sm:$0x1]
    %v42 = vld [vmem:[#allocation6 + $0x2] sm:$0x1]
    %s43 = sld [smem:[#allocation2]]
    %v44 = vstv %s43
    %v45 = vmul.f32 %v44, %v40
    %s46 = sld [smem:[#allocation2 + $0x4]]
    %v47 = vstv %s46
    %v48 = vmul.f32 %v47, %v41
    %v49 = vadd.f32 %v45, %v48
    %s50 = sld [smem:[#allocation2 + $0x8]]
    %v51 = vstv %s50
    %v52 = vmul.f32 %v51, %v42
    %v53 = vadd.f32 %v49, %v52
    %vm54 = vcmask 1040384
    %v55 = vsel %vm54, %v53, 0.0
    %56 = vadd.xlane.f32.xlu0 %v55
    %v57 = vpop.xlane.xlu0 %56
    %v58 = vmul.f32 %v57, 0.125
    %v59 = vsub.f32 %v53, %v58
    %v60 = vmul.f32 %v59, %v59
    %v61 = vmul.f32 %v60, %v39
    %v62 = vsel %vm54, %v61, 0.0
    %63 = vadd.xlane.f32.xlu0 %v62
    %v64 = vpop.xlane.xlu0 %63
    %v65 = vmul.f32 %v64, 0.125
    %v66 = vadd.f32 %v65, 1e-05
    %v67 = vrsqrt.pop %v66
    %v68 = vmul.f32 %v59, %v67
    %s69 = sld [smem:[#allocation2 + $0x1]]
    %v70 = vstv %s69
    %v71 = vmul.f32 %v70, %v40
    %s72 = sld [smem:[#allocation2 + $0x5]]
    %v73 = vstv %s72
    %v74 = vmul.f32 %v73, %v41
    %v75 = vadd.f32 %v71, %v74
    %s76 = sld [smem:[#allocation2 + $0x9]]
    %v77 = vstv %s76
    %v78 = vmul.f32 %v77, %v42
    %v79 = vadd.f32 %v75, %v78
    %v80 = vsel %vm54, %v79, 0.0
    %81 = vadd.xlane.f32.xlu0 %v80
    %v82 = vpop.xlane.xlu0 %81
    %v83 = vmul.f32 %v82, 0.125
    %v84 = vsub.f32 %v79, %v83
    %v85 = vmul.f32 %v84, %v84
    %v86 = vmul.f32 %v85, %v39
    %v87 = vsel %vm54, %v86, 0.0
    %88 = vadd.xlane.f32.xlu0 %v87
    %v89 = vpop.xlane.xlu0 %88
    %v90 = vmul.f32 %v89, 0.125
    %v91 = vadd.f32 %v90, 1e-05
    %v92 = vrsqrt.pop %v91
    %v93 = vmul.f32 %v84, %v92
    %s94 = sld [smem:[#allocation2 + $0x2]]
    %v95 = vstv %s94
    %v96 = vmul.f32 %v95, %v40
    %s97 = sld [smem:[#allocation2 + $0x6]]
    %v98 = vstv %s97
    %v99 = vmul.f32 %v98, %v41
    %v100 = vadd.f32 %v96, %v99
    %s101 = sld [smem:[#allocation2 + $0xa]]
    %v102 = vstv %s101
    %v103 = vmul.f32 %v102, %v42
    %v104 = vadd.f32 %v100, %v103
    %v105 = vsel %vm54, %v104, 0.0
    %106 = vadd.xlane.f32.xlu0 %v105
    %v107 = vpop.xlane.xlu0 %106
    %v108 = vmul.f32 %v107, 0.125
    %v109 = vsub.f32 %v104, %v108
    %v110 = vmul.f32 %v109, %v109
    %v111 = vmul.f32 %v110, %v39
    %v112 = vsel %vm54, %v111, 0.0
    %113 = vadd.xlane.f32.xlu0 %v112
    %v114 = vpop.xlane.xlu0 %113
    %v115 = vmul.f32 %v114, 0.125
    %v116 = vadd.f32 %v115, 1e-05
    %v117 = vrsqrt.pop %v116
    %v118 = vmul.f32 %v109, %v117
    %s119 = sld [smem:[#allocation2 + $0x3]]
    %v120 = vstv %s119
    %v121 = vmul.f32 %v120, %v40
    %s122 = sld [smem:[#allocation2 + $0x7]]
    %v123 = vstv %s122
    %v124 = vmul.f32 %v123, %v41
    %v125 = vadd.f32 %v121, %v124
    %s126 = sld [smem:[#allocation2 + $0xb]]
    %v127 = vstv %s126
    %v128 = vmul.f32 %v127, %v42
    %v129 = vadd.f32 %v125, %v128
    %v130 = vsel %vm54, %v129, 0.0
    %131 = vadd.xlane.f32.xlu0 %v130
    %v132 = vpop.xlane.xlu0 %131
    %v133 = vmul.f32 %v132, 0.125
    %v134 = vsub.f32 %v129, %v133
    %v135 = vmul.f32 %v134, %v134
    %v136 = vmul.f32 %v135, %v39
    %v137 = vsel %vm54, %v136, 0.0
    %138 = vadd.xlane.f32.xlu0 %v137
    %v139 = vpop.xlane.xlu0 %138
    %v140 = vmul.f32 %v139, 0.125
    %v141 = vadd.f32 %v140, 1e-05
    %v142 = vrsqrt.pop %v141
    %v143 = vmul.f32 %v134, %v142
    %s144 = sld [smem:[#allocation2 + $0xc]]
    %v145 = vstv %s144
    %v146 = vmul.f32 %v145, %v68
    %s147 = sld [smem:[#allocation2 + $0x11]]
    %v148 = vstv %s147
    %v149 = vmul.f32 %v148, %v93
    %v150 = vadd.f32 %v146, %v149
    %s151 = sld [smem:[#allocation2 + $0x16]]
    %v152 = vstv %s151
    %v153 = vmul.f32 %v152, %v118
    %v154 = vadd.f32 %v150, %v153
    %s155 = sld [smem:[#allocation2 + $0x1b]]
    %v156 = vstv %s155
    %v157 = vmul.f32 %v156, %v143
    %v158 = vadd.f32 %v154, %v157
    %s159 = sld [smem:[#allocation2 + $0x20]]
    %v160 = vstv %s159
    %v161 = vadd.f32 %v158, %v160
    %162 = vst [vmem:[#allocation7] sm:$0x1] %v161
    %s163 = sld [smem:[#allocation2 + $0xd]]
    %v164 = vstv %s163
    %v165 = vmul.f32 %v164, %v68
    %s166 = sld [smem:[#allocation2 + $0x12]]
    %v167 = vstv %s166
    %v168 = vmul.f32 %v167, %v93
    %v169 = vadd.f32 %v165, %v168
    %s170 = sld [smem:[#allocation2 + $0x17]]
    %v171 = vstv %s170
    %v172 = vmul.f32 %v171, %v118
    %v173 = vadd.f32 %v169, %v172
    %s174 = sld [smem:[#allocation2 + $0x1c]]
    %v175 = vstv %s174
    %v176 = vmul.f32 %v175, %v143
    %v177 = vadd.f32 %v173, %v176
    %s178 = sld [smem:[#allocation2 + $0x21]]
    %v179 = vstv %s178
    %v180 = vadd.f32 %v177, %v179
    %181 = vst [vmem:[#allocation7 + $0x1] sm:$0x1] %v180
    %s182 = sld [smem:[#allocation2 + $0xe]]
    %v183 = vstv %s182
    %v184 = vmul.f32 %v183, %v68
    %s185 = sld [smem:[#allocation2 + $0x13]]
    %v186 = vstv %s185
    %v187 = vmul.f32 %v186, %v93
    %v188 = vadd.f32 %v184, %v187
    %s189 = sld [smem:[#allocation2 + $0x18]]
    %v190 = vstv %s189
    %v191 = vmul.f32 %v190, %v118
    %v192 = vadd.f32 %v188, %v191
    %s193 = sld [smem:[#allocation2 + $0x1d]]
    %v194 = vstv %s193
    %v195 = vmul.f32 %v194, %v143
    %v196 = vadd.f32 %v192, %v195
    %s197 = sld [smem:[#allocation2 + $0x22]]
    %v198 = vstv %s197
    %v199 = vadd.f32 %v196, %v198
    %200 = vst [vmem:[#allocation7 + $0x2] sm:$0x1] %v199
    %s201 = sld [smem:[#allocation2 + $0xf]]
    %v202 = vstv %s201
    %v203 = vmul.f32 %v202, %v68
    %s204 = sld [smem:[#allocation2 + $0x14]]
    %v205 = vstv %s204
    %v206 = vmul.f32 %v205, %v93
    %v207 = vadd.f32 %v203, %v206
    %s208 = sld [smem:[#allocation2 + $0x19]]
    %v209 = vstv %s208
    %v210 = vmul.f32 %v209, %v118
    %v211 = vadd.f32 %v207, %v210
    %s212 = sld [smem:[#allocation2 + $0x1e]]
    %v213 = vstv %s212
    %v214 = vmul.f32 %v213, %v143
    %v215 = vadd.f32 %v211, %v214
    %s216 = sld [smem:[#allocation2 + $0x23]]
    %v217 = vstv %s216
    %v218 = vadd.f32 %v215, %v217
    %219 = vst [vmem:[#allocation7 + $0x3] sm:$0x1] %v218
    %s220 = sld [smem:[#allocation2 + $0x10]]
    %v221 = vstv %s220
    %v222 = vmul.f32 %v221, %v68
    %s223 = sld [smem:[#allocation2 + $0x15]]
    %v224 = vstv %s223
    %v225 = vmul.f32 %v224, %v93
    %v226 = vadd.f32 %v222, %v225
    %s227 = sld [smem:[#allocation2 + $0x1a]]
    %v228 = vstv %s227
    %v229 = vmul.f32 %v228, %v118
    %v230 = vadd.f32 %v226, %v229
    %s231 = sld [smem:[#allocation2 + $0x1f]]
    %v232 = vstv %s231
    %v233 = vmul.f32 %v232, %v143
    %v234 = vadd.f32 %v230, %v233
    %s235 = sld [smem:[#allocation2 + $0x24]]
    %v236 = vstv %s235
    %v237 = vadd.f32 %v234, %v236
    %238 = vst [vmem:[#allocation7 + $0x4] sm:$0x1] %v237
    %239 = vst [vmem:[#allocation7 + $0x5] sm:$0x7] 0.0
    // Predicated region
    $region18: #{tpu_custom_call.1} parent=1 // pred_check
      _
    $region19: #{tpu_custom_call.1} parent=1 // pred_check_branch
      %241 = sbr.rel (0) target = $region21
    $region20: #{tpu_custom_call.1} parent=1 // pred_region
      %s243 = ssub.s32 128, 128
      %244 = vsyncadd [#allocation4], %s243
      %s246 = sshll.u32 [#allocation7], 4
      %s247 = int_to_ptr.vmem [resolvable:$true] %s246
      %249 = dma.vmem_to_hbm [thread:$0]  %s247, 128, %s2, [#allocation4]
    $region21: #{tpu_custom_call.1} parent=1 // pred_fallthru
      _
    // Predicated region
    $region22: #{tpu_custom_call.1} parent=1 // pred_check
      _
    $region23: #{tpu_custom_call.1} parent=1 // pred_check_branch
      %251 = sbr.rel (0) target = $region25
    $region24: #{tpu_custom_call.1} parent=1 // pred_region
      %252 = dma.done [#allocation4], 128
    $region25: #{tpu_custom_call.1} parent=1 // pred_fallthru
      _
    %253 = vsyncpa [#allocation3], 1
    %254 = vsyncpa [#allocation4], 1
    %255 = vsyncpa [#allocation5], 1

</llo_original>
